<compile_context>
chip_gen: v5e
topology: v5e:2x2
jax: 0.10.0
libtpu: 0.0.40
codegen_flags: <defaults>
</compile_context>

<pallas_src>
import functools

import jax
import jax.numpy as jnp
from jax.experimental import pallas as pl
from jax.experimental.pallas import tpu as pltpu


LAY1 = 32
LAY2 = 64
LAYS = LAY1 + LAY2     # 96 rows of the fused fc1/fc3 output
LN_EPS = 1e-5          # torch.nn.LayerNorm default
_SLOT = 128            # lane-aligned packing stride inside the parameter slab
_N_SLOTS = 9


def _cdiv(a, b):
    return -(-a // b)


def _round_up(x, m):
    return _cdiv(x, m) * m


def _auto_tile(B):
    b128 = _round_up(max(B, 1), 128)
    if b128 <= 256:
        return b128
    # Big tiles amortize the ~0.35us fixed per-grid-step overhead (the kernel
    # is VPU/XLU-bound, not VMEM- or MXU-bound).  Keep the grid length >= 2 so
    # v7x's two TensorCores both get work (harmless on 1-TC v5e/v6e).  Cap at
    # 32K lanes: streamed tiles + resident params stay < ~4 MiB double
    # buffered, far under every generation's scoped VMEM limit.
    n_steps = max(2, _cdiv(b128, 32768))
    return _round_up(_cdiv(b128, n_steps), 128)


def critic_kernel(xcat_ref, pP_ref, bq_ref, out_ref, *, d_in, n_actions):
    """One batch tile. Batch lives on the 128-lane axis (lane-dense store)."""
    S = _SLOT
    xcat = xcat_ref[...]                                   # (d_in+A, Bt) f32

    # ---- unpack the resident, slot-aligned parameter slab (static slices) --
    w13 = pP_ref[:, 0:d_in + n_actions]                    # (96, d_in+A) blk-diag
    b13 = pP_ref[:, 1 * S:1 * S + 1]                       # (96, 1) = [b1'; b3]
    g1  = pP_ref[0:LAY1, 2 * S:2 * S + 1]                  # (32, 1)
    be1 = pP_ref[0:LAY1, 3 * S:3 * S + 1]
    w2t = pP_ref[0:LAY2, 4 * S:4 * S + LAY1]               # (64, 32)
    b2  = pP_ref[0:LAY2, 5 * S:5 * S + 1]                  # (64, 1)
    g2  = pP_ref[0:LAY2, 6 * S:6 * S + 1]
    be2 = pP_ref[0:LAY2, 7 * S:7 * S + 1]
    wq  = pP_ref[0:1, 8 * S:8 * S + LAY2]                  # (1, 64) q-head row
    bq  = bq_ref[0, 0]                                     # scalar (SMEM)

    # ---- fused fc1(state) + fc3(action): one block-diagonal MXU matmul -----
    h = jnp.dot(w13, xcat, preferred_element_type=jnp.float32) + b13   # (96, Bt)
    sv = h[0:LAY1, :]                  # fc1(state)+b1'  (zero-mean over features)
    av = h[LAY1:LAYS, :]               # fc3(action)+b3

    # ---- LayerNorm(32): weights pre-centered on host => mean is exactly 0 --
    var1 = jnp.mean(sv * sv, axis=0, keepdims=True)
    sv = sv * jax.lax.rsqrt(var1 + LN_EPS) * g1 + be1
    sv = jnp.maximum(sv, 0.0)

    # ---- fc2 -> LayerNorm(64) (pre-centered as well) ------------------------
    sv = jnp.dot(w2t, sv, preferred_element_type=jnp.float32) + b2      # (64, Bt)
    var2 = jnp.mean(sv * sv, axis=0, keepdims=True)
    sv = sv * jax.lax.rsqrt(var2 + LN_EPS) * g2 + be2

    # ---- action branch relu, fuse, q head on the MXU ------------------------
    av = jnp.maximum(av, 0.0)
    sa = jnp.maximum(sv + av, 0.0)                                       # (64, Bt)
    q = jnp.dot(wq, sa, preferred_element_type=jnp.float32) + bq         # (1, Bt)

    out_ref[...] = q.astype(out_ref.dtype)                               # lane-dense


def _pack_params(p, d_in, n_actions):
    """Pack all parameters into one lane-slot-aligned f32 slab + SMEM scalar.

    fc1/fc2 weights and biases are pre-centered over their output features so
    the in-kernel LayerNorm mean is identically zero (exact in real
    arithmetic; only rounding differs)."""
    f32 = jnp.float32
    w1 = p["w1"].astype(f32)                               # (d_in, 32)
    b1 = p["b1"].astype(f32).reshape(1, LAY1)
    w1c = w1 - jnp.mean(w1, axis=1, keepdims=True)
    b1c = b1 - jnp.mean(b1)
    w2 = p["w2"].astype(f32)                               # (32, 64)
    b2 = p["b2"].astype(f32).reshape(1, LAY2)
    w2c = w2 - jnp.mean(w2, axis=1, keepdims=True)
    b2c = b2 - jnp.mean(b2)
    w3 = p["w3"].astype(f32)                               # (A, 64)
    b3 = p["b3"].astype(f32).reshape(1, LAY2)
    wq = p["wq"].astype(f32).reshape(LAY2)

    S = _SLOT
    pP = jnp.zeros((LAYS, _N_SLOTS * S), f32)
    # slot 0: block-diagonal fused weight  [w1c^T  0 ; 0  w3^T]
    pP = pP.at[0:LAY1, 0:d_in].set(w1c.T)
    pP = pP.at[LAY1:LAYS, d_in:d_in + n_actions].set(w3.T)
    # slot 1: fused bias column [b1c ; b3]
    pP = pP.at[0:LAY1, 1 * S].set(b1c.reshape(-1))
    pP = pP.at[LAY1:LAYS, 1 * S].set(b3.reshape(-1))
    # slots 2/3: LayerNorm(32) gamma / beta
    pP = pP.at[0:LAY1, 2 * S].set(p["g1"].astype(f32).reshape(-1))
    pP = pP.at[0:LAY1, 3 * S].set(p["be1"].astype(f32).reshape(-1))
    # slot 4: fc2 weight (transposed, centered)
    pP = pP.at[0:LAY2, 4 * S:4 * S + LAY1].set(w2c.T)
    # slots 5/6/7: fc2 bias (centered), LayerNorm(64) gamma / beta
    pP = pP.at[0:LAY2, 5 * S].set(b2c.reshape(-1))
    pP = pP.at[0:LAY2, 6 * S].set(p["g2"].astype(f32).reshape(-1))
    pP = pP.at[0:LAY2, 7 * S].set(p["be2"].astype(f32).reshape(-1))
    # slot 8: q-head weight as a row (consumed as a (1,64) MXU operand)
    pP = pP.at[0, 8 * S:8 * S + LAY2].set(wq)

    bq = p["bq"].astype(f32).reshape(1, 1)
    return pP, bq


def critic_forward(state, action, params, *, tile_b=None):
    B, d_in = state.shape
    n_actions = action.shape[1]
    assert d_in + n_actions <= _SLOT
    assert params["w1"].shape == (d_in, LAY1)

    if tile_b is None:
        tile_b = _auto_tile(B)
    else:
        tile_b = max(128, _round_up(tile_b, 128))
    b_pad = _round_up(B, tile_b)
    grid = (b_pad // tile_b,)

    # Sanity: per-step VMEM (double-buffered streamed tiles + resident params)
    # must stay well under the smallest scoped limit (v5e 16 MiB). It is
    # always < ~4 MiB for tile_b <= 32768, so step-count amortization — not
    # VMEM — is the tuning lever.
    vmem_bytes = (2 * (d_in + n_actions) * tile_b * 4 +    # xcat, 2 buffers
                  2 * tile_b * 4 +                         # output, 2 buffers
                  2 * LAYS * _N_SLOTS * _SLOT * 4)         # resident params
    assert vmem_bytes < 8 * 1024 * 1024

    # Single fused pad+transpose+concat in the wrapper: one lane-major
    # (d_in+A, b_pad) slab is streamed by the kernel (one DMA per step).
    f32 = jnp.float32
    xcat = jnp.concatenate([state.astype(f32), action.astype(f32)], axis=1)
    xcat = jnp.pad(xcat, ((0, b_pad - B), (0, 0))).T       # (d_in+A, b_pad)

    pP, bq = _pack_params(params, d_in, n_actions)

    kernel = functools.partial(critic_kernel, d_in=d_in, n_actions=n_actions)

    out = pl.pallas_call(
        kernel,
        out_shape=jax.ShapeDtypeStruct((1, b_pad), jnp.float32),
        grid=grid,
        in_specs=[
            pl.BlockSpec((d_in + n_actions, tile_b), lambda i: (0, i)),  # streamed
            pl.BlockSpec(pP.shape, lambda i: (0, 0)),                    # resident params
            pl.BlockSpec(memory_space=pltpu.MemorySpace.SMEM),           # q-head bias
        ],
        out_specs=pl.BlockSpec((1, tile_b), lambda i: (0, i)),           # lane-dense
        compiler_params=pltpu.CompilerParams(
            dimension_semantics=("parallel",),   # shard batch tiles across TCs (v7x)
        ),
    )(xcat, pP, bq)

    return out.reshape(b_pad, 1)[:B]


def init_params(key, input_dim, n_actions):
    # Deterministic init mirroring the PyTorch __init__ ranges.
    ks = jax.random.split(key, 8)
    f1 = 1.0 / jnp.sqrt(jnp.float32(input_dim))   # fan_in of fc1
    f2 = 1.0 / jnp.sqrt(jnp.float32(LAY1))        # fan_in of fc2
    f3 = 0.003

    def u(k, shape, lim):
        return jax.random.uniform(k, shape, jnp.float32, -lim, lim)

    return {
        # weights stored [in, out] (transpose of torch's [out, in])
        "w1": u(ks[0], (input_dim, LAY1), f1),
        "b1": u(ks[1], (1, LAY1), f1),
        "g1": jnp.ones((1, LAY1), jnp.float32),    # LayerNorm weight
        "be1": jnp.zeros((1, LAY1), jnp.float32),  # LayerNorm bias
        "w2": u(ks[2], (LAY1, LAY2), f2),
        "b2": u(ks[3], (1, LAY2), f2),
        "g2": jnp.ones((1, LAY2), jnp.float32),
        "be2": jnp.zeros((1, LAY2), jnp.float32),
        # fc3: torch default init ~ uniform(+-1/sqrt(fan_in))
        "w3": u(ks[4], (n_actions, LAY2), 1.0 / jnp.sqrt(jnp.float32(n_actions))),
        "b3": u(ks[5], (1, LAY2), 1.0 / jnp.sqrt(jnp.float32(n_actions))),
        "wq": u(ks[6], (LAY2, 1), f3),
        "bq": u(ks[7], (1, 1), f3),
    }


def reference_forward(state, action, p):
    # Pure-JAX reference (f32, high-precision dots) for sanity checking.
    hi = jax.lax.Precision.HIGHEST

    def ln(x, g, b):
        m = jnp.mean(x, -1, keepdims=True)
        v = jnp.mean((x - m) ** 2, -1, keepdims=True)
        return (x - m) / jnp.sqrt(v + LN_EPS) * g + b

    sv = jnp.maximum(ln(jnp.dot(state, p["w1"], precision=hi) + p["b1"],
                        p["g1"], p["be1"]), 0.0)
    sv = ln(jnp.dot(sv, p["w2"], precision=hi) + p["b2"], p["g2"], p["be2"])
    av = jnp.maximum(jnp.dot(action, p["w3"], precision=hi) + p["b3"], 0.0)
    sa = jnp.maximum(sv + av, 0.0)
    return jnp.dot(sa, p["wq"], precision=hi) + p["bq"]


# TODO(synk): optimizer (Adam), checkpoint save/load and device plumbing from
# the PyTorch module are training infrastructure, not part of forward().

if __name__ == "__main__":
    key = jax.random.PRNGKey(0)
    k_s1, k_a1, k_p, k_s2, k_a2, k_s3, k_a3 = jax.random.split(key, 7)

    B = 2
    INPUT_DIM = 8     # *input_shape of the Critic
    N_ACTIONS = 2

    params = init_params(k_p, INPUT_DIM, N_ACTIONS)

    # Small-batch check (single tile).
    state = jax.random.normal(k_s1, (B, INPUT_DIM), jnp.float32)
    action = jax.random.normal(k_a1, (B, N_ACTIONS), jnp.float32)
    out = jax.block_until_ready(critic_forward(state, action, params))
    ref = reference_forward(state, action, params)
    assert out.shape == (B, 1)
    assert jnp.allclose(out, ref, atol=2e-5, rtol=2e-5)

    # Multi-tile grid + padding check (B not a multiple of the tile).
    B2 = 300
    state2 = jax.random.normal(k_s2, (B2, INPUT_DIM), jnp.float32)
    action2 = jax.random.normal(k_a2, (B2, N_ACTIONS), jnp.float32)
    out2 = jax.block_until_ready(critic_forward(state2, action2, params, tile_b=128))
    ref2 = reference_forward(state2, action2, params)
    assert out2.shape == (B2, 1)
    assert jnp.allclose(out2, ref2, atol=2e-5, rtol=2e-5)

    # Auto-tile path: big tiles, grid length >= 2 (megacore-friendly on v7x).
    B3 = 1000
    state3 = jax.random.normal(k_s3, (B3, INPUT_DIM), jnp.float32)
    action3 = jax.random.normal(k_a3, (B3, N_ACTIONS), jnp.float32)
    out3 = jax.block_until_ready(critic_forward(state3, action3, params))
    ref3 = reference_forward(state3, action3, params)
    assert out3.shape == (B3, 1)
    assert jnp.allclose(out3, ref3, atol=2e-5, rtol=2e-5)

    print("KERNEL_OK")
</pallas_src>

<mosaic_0001>
module attributes {stable_mosaic.version = 11 : i64} {
  func.func @critic_kernel(%arg0: i32, %arg1: memref<10x128xf32, #tpu.memory_space<vmem>>, %arg2: memref<96x1152xf32, #tpu.memory_space<vmem>>, %arg3: memref<1x1xf32, #tpu.memory_space<smem>>, %arg4: memref<1x128xf32, #tpu.memory_space<vmem>>) attributes {dimension_semantics = [#tpu.dimension_semantics<parallel>], iteration_bounds = array<i64: 1>, scalar_prefetch = 0 : i64, scratch_operands = 0 : i64, tpu.core_type = #tpu.core_type<tc>, window_params = [{transform_indices = @transform_0, window_bounds = array<i64: 10, 128>}, {pipeline_mode = #tpu.pipeline_mode<synchronous>, transform_indices = @transform_1, window_bounds = array<i64: 96, 1152>}, {transform_indices = @transform_2, window_bounds = array<i64: 1, 1>}, {transform_indices = @transform_3, window_bounds = array<i64: 1, 128>}]} {
    %c0 = arith.constant 0 : index
    %c0_0 = arith.constant 0 : index
    %0 = vector.load %arg1[%c0, %c0_0] : memref<10x128xf32, #tpu.memory_space<vmem>>, vector<10x128xf32>
    %c0_1 = arith.constant 0 : index
    %c0_2 = arith.constant 0 : index
    %1 = vector.load %arg2[%c0_1, %c0_2] : memref<96x1152xf32, #tpu.memory_space<vmem>>, vector<96x10xf32>
    %c0_3 = arith.constant 0 : index
    %c128 = arith.constant 128 : index
    %2 = vector.load %arg2[%c0_3, %c128] : memref<96x1152xf32, #tpu.memory_space<vmem>>, vector<96x1xf32>
    %c0_4 = arith.constant 0 : index
    %c256 = arith.constant 256 : index
    %3 = vector.load %arg2[%c0_4, %c256] : memref<96x1152xf32, #tpu.memory_space<vmem>>, vector<32x1xf32>
    %c0_5 = arith.constant 0 : index
    %c384 = arith.constant 384 : index
    %4 = vector.load %arg2[%c0_5, %c384] : memref<96x1152xf32, #tpu.memory_space<vmem>>, vector<32x1xf32>
    %c0_6 = arith.constant 0 : index
    %c512 = arith.constant 512 : index
    %5 = vector.load %arg2[%c0_6, %c512] : memref<96x1152xf32, #tpu.memory_space<vmem>>, vector<64x32xf32>
    %c0_7 = arith.constant 0 : index
    %c640 = arith.constant 640 : index
    %6 = vector.load %arg2[%c0_7, %c640] : memref<96x1152xf32, #tpu.memory_space<vmem>>, vector<64x1xf32>
    %c0_8 = arith.constant 0 : index
    %c768 = arith.constant 768 : index
    %7 = vector.load %arg2[%c0_8, %c768] : memref<96x1152xf32, #tpu.memory_space<vmem>>, vector<64x1xf32>
    %c0_9 = arith.constant 0 : index
    %c896 = arith.constant 896 : index
    %8 = vector.load %arg2[%c0_9, %c896] : memref<96x1152xf32, #tpu.memory_space<vmem>>, vector<64x1xf32>
    %c0_10 = arith.constant 0 : index
    %c1024 = arith.constant 1024 : index
    %9 = vector.load %arg2[%c0_10, %c1024] : memref<96x1152xf32, #tpu.memory_space<vmem>>, vector<1x64xf32>
    %c0_11 = arith.constant 0 : index
    %c0_12 = arith.constant 0 : index
    %10 = memref.load %arg3[%c0_11, %c0_12] : memref<1x1xf32, #tpu.memory_space<smem>>
    %cst = arith.constant dense<0.000000e+00> : vector<96x128xf32>
    %11 = tpu.matmul %1, %0, %cst {dimension_numbers = #tpu.dot_dimension_numbers<[1], [0], [0], [1], [0, 0, 1, 1], [], []>} : vector<96x10xf32>, vector<10x128xf32>, vector<96x128xf32> -> vector<96x128xf32>
    %12 = vector.broadcast %2 : vector<96x1xf32> to vector<96x128xf32>
    %13 = arith.addf %11, %12 : vector<96x128xf32>
    %14 = vector.extract_strided_slice %13 {offsets = [0, 0], sizes = [32, 128], strides = [1, 1]} : vector<96x128xf32> to vector<32x128xf32>
    %15 = vector.extract_strided_slice %13 {offsets = [32, 0], sizes = [64, 128], strides = [1, 1]} : vector<96x128xf32> to vector<64x128xf32>
    %16 = arith.mulf %14, %14 : vector<32x128xf32>
    %cst_13 = arith.constant dense<0.000000e+00> : vector<128xf32>
    %17 = vector.multi_reduction <add>, %16, %cst_13 [0] : vector<32x128xf32> to vector<128xf32>
    %18 = vector.shape_cast %17 : vector<128xf32> to vector<1x128xf32>
    %cst_14 = arith.constant 3.200000e+01 : f32
    %19 = vector.broadcast %cst_14 : f32 to vector<1x128xf32>
    %20 = arith.divf %18, %19 : vector<1x128xf32>
    %cst_15 = arith.constant 9.99999974E-6 : f32
    %21 = vector.broadcast %cst_15 : f32 to vector<1x128xf32>
    %22 = arith.addf %20, %21 : vector<1x128xf32>
    %23 = math.rsqrt %22 : vector<1x128xf32>
    %24 = vector.broadcast %23 : vector<1x128xf32> to vector<32x128xf32>
    %25 = arith.mulf %14, %24 : vector<32x128xf32>
    %26 = vector.broadcast %3 : vector<32x1xf32> to vector<32x128xf32>
    %27 = arith.mulf %25, %26 : vector<32x128xf32>
    %28 = vector.broadcast %4 : vector<32x1xf32> to vector<32x128xf32>
    %29 = arith.addf %27, %28 : vector<32x128xf32>
    %cst_16 = arith.constant 0.000000e+00 : f32
    %30 = vector.broadcast %cst_16 : f32 to vector<32x128xf32>
    %31 = arith.maximumf %29, %30 : vector<32x128xf32>
    %cst_17 = arith.constant dense<0.000000e+00> : vector<64x128xf32>
    %32 = tpu.matmul %5, %31, %cst_17 {dimension_numbers = #tpu.dot_dimension_numbers<[1], [0], [0], [1], [0, 0, 1, 1], [], []>} : vector<64x32xf32>, vector<32x128xf32>, vector<64x128xf32> -> vector<64x128xf32>
    %33 = vector.broadcast %6 : vector<64x1xf32> to vector<64x128xf32>
    %34 = arith.addf %32, %33 : vector<64x128xf32>
    %35 = arith.mulf %34, %34 : vector<64x128xf32>
    %cst_18 = arith.constant dense<0.000000e+00> : vector<128xf32>
    %36 = vector.multi_reduction <add>, %35, %cst_18 [0] : vector<64x128xf32> to vector<128xf32>
    %37 = vector.shape_cast %36 : vector<128xf32> to vector<1x128xf32>
    %cst_19 = arith.constant 6.400000e+01 : f32
    %38 = vector.broadcast %cst_19 : f32 to vector<1x128xf32>
    %39 = arith.divf %37, %38 : vector<1x128xf32>
    %cst_20 = arith.constant 9.99999974E-6 : f32
    %40 = vector.broadcast %cst_20 : f32 to vector<1x128xf32>
    %41 = arith.addf %39, %40 : vector<1x128xf32>
    %42 = math.rsqrt %41 : vector<1x128xf32>
    %43 = vector.broadcast %42 : vector<1x128xf32> to vector<64x128xf32>
    %44 = arith.mulf %34, %43 : vector<64x128xf32>
    %45 = vector.broadcast %7 : vector<64x1xf32> to vector<64x128xf32>
    %46 = arith.mulf %44, %45 : vector<64x128xf32>
    %47 = vector.broadcast %8 : vector<64x1xf32> to vector<64x128xf32>
    %48 = arith.addf %46, %47 : vector<64x128xf32>
    %cst_21 = arith.constant 0.000000e+00 : f32
    %49 = vector.broadcast %cst_21 : f32 to vector<64x128xf32>
    %50 = arith.maximumf %15, %49 : vector<64x128xf32>
    %51 = arith.addf %48, %50 : vector<64x128xf32>
    %cst_22 = arith.constant 0.000000e+00 : f32
    %52 = vector.broadcast %cst_22 : f32 to vector<64x128xf32>
    %53 = arith.maximumf %51, %52 : vector<64x128xf32>
    %cst_23 = arith.constant dense<0.000000e+00> : vector<1x128xf32>
    %54 = tpu.matmul %9, %53, %cst_23 {dimension_numbers = #tpu.dot_dimension_numbers<[1], [0], [0], [1], [0, 0, 1, 1], [], []>} : vector<1x64xf32>, vector<64x128xf32>, vector<1x128xf32> -> vector<1x128xf32>
    %55 = vector.broadcast %10 : f32 to vector<1x128xf32>
    %56 = arith.addf %54, %55 : vector<1x128xf32>
    %c0_24 = arith.constant 0 : index
    %c0_25 = arith.constant 0 : index
    %57 = vector.load %arg4[%c0_24, %c0_25] : memref<1x128xf32, #tpu.memory_space<vmem>>, vector<1x128xf32>
    tpu.vector_store %arg4[%c0_24, %c0_25], %56 {strides = array<i32>} : memref<1x128xf32, #tpu.memory_space<vmem>>, vector<1x128xf32>,
    return
  }
  func.func @transform_0(%arg0: i32) -> (i32, i32) {
    %c0_i32 = arith.constant 0 : i32
    %c0_i32_0 = arith.constant 0 : i32
    return %c0_i32, %arg0 : i32, i32
  }
  func.func @transform_1(%arg0: i32) -> (i32, i32) {
    %c0_i32 = arith.constant 0 : i32
    %c0_i32_0 = arith.constant 0 : i32
    %c0_i32_1 = arith.constant 0 : i32
    return %c0_i32, %c0_i32_0 : i32, i32
  }
  func.func @transform_2(%arg0: i32) -> (i32, i32) {
    %c0_i32 = arith.constant 0 : i32
    %c0_i32_0 = arith.constant 0 : i32
    %c0_i32_1 = arith.constant 0 : i32
    return %c0_i32, %c0_i32_0 : i32, i32
  }
  func.func @transform_3(%arg0: i32) -> (i32, i32) {
    %c0_i32 = arith.constant 0 : i32
    %c0_i32_0 = arith.constant 0 : i32
    return %c0_i32, %arg0 : i32, i32
  }
}

</mosaic_0001>

<llo_original>
// kernel: tpu_custom_call.1
$region0: #{tpu_custom_call.1}
  #allocation0 [shape = 'u32[]', space=smem, size = 0x4, offset = 0x4, fixed_abs, tag = 'smem constant byte address 0x4 - core index']
  #allocation1 [shape = 'u32[72,128]{1,0:T(1,128)}', space=vmem, size = 0x9000, scoped, tag = 'internal scratch']
  #allocation2 [shape = 'f32[1,1]{1,0:T(1,128)S(6)}', space=smem, size = 0x200, scoped, tag = 'scoped memory for tpu_custom_call.1']
  %s0 = inlined_call_operand.hbm [shape: f32[10,128], index: 0, kind: input, shape index: {}]
  %s1 = inlined_call_operand.hbm [shape: f32[96,1152], index: 1, kind: input, shape index: {}]
  %s2 = inlined_call_operand.<no memory space> [shape: f32[1,1], index: 2, kind: input, shape index: {}]
  %s3 = inlined_call_operand.hbm [shape: f32[1,128], index: 3, kind: output, shape index: {}]
  %s4 = sld [smem:[#allocation0]]
  $region30: #{tpu_custom_call.1} parent=0
    _
  %s6 = ssub.s32 1, %s4
  %s7 = scalar_select 0, %s6, %s4
  %8 = sst [smem:[#allocation2]] %s2
  $region1: #{tpu_custom_call.1} parent=0
    #allocation3 [shape = 'u8[8192]{0}', space=vmem, size = 0x2000, scoped, tag = 'input window, operand 0, single buffered']
    #allocation4 [shape = 's32[1]{0}', space=sflag, size = 0x4, scoped, tag = 'scoped memory for tpu_custom_call.1']
    #allocation5 [shape = 's32[1]{0}', space=sflag, size = 0x4, scoped, tag = 'scoped memory for tpu_custom_call.1']
    #allocation6 [shape = 'u8[442368]{0}', space=vmem, size = 0x6c000, scoped, tag = 'input window, operand 1, single buffered']
    #allocation7 [shape = 's32[1]{0}', space=sflag, size = 0x4, scoped, tag = 'scoped memory for tpu_custom_call.1']
    #allocation8 [shape = 'u8[512]{0}', space=vmem, size = 0x400, scoped, tag = 'output window, operand 0, single buffered']
    %9 = vsyncpa [#allocation4], 0
    %10 = vsyncpa [#allocation7], 0
    %11 = vsyncpa [#allocation5], 0
    // Predicated region
    $region2: #{tpu_custom_call.1} parent=1 // pred_check
      _
    $region3: #{tpu_custom_call.1} parent=1 // pred_check_branch
      %13 = sbr.rel (0) target = $region5
    $region4: #{tpu_custom_call.1} parent=1 // pred_region
      %15 = vsyncadd [#allocation4], 0
      %s16 = sshll.u32 %s0, 4
      %s17 = int_to_ptr.hbm [resolvable:$true] %s16
      %s18 = sshll.u32 [#allocation3], 4
      %s19 = int_to_ptr.vmem [resolvable:$true] %s18
      %24 = dma.hbm_to_vmem [thread:$0]  %s17, 256, %s19, [#allocation4], 128, 128, 8
    $region5: #{tpu_custom_call.1} parent=1 // pred_fallthru
      _
    // Predicated region
    $region6: #{tpu_custom_call.1} parent=1 // pred_check
      _
    $region7: #{tpu_custom_call.1} parent=1 // pred_check_branch
      %26 = sbr.rel (0) target = $region9
    $region8: #{tpu_custom_call.1} parent=1 // pred_region
      %28 = vsyncadd [#allocation7], 0
      %s29 = sshll.u32 %s1, 4
      %s30 = int_to_ptr.hbm [resolvable:$true] %s29
      %s31 = sshll.u32 [#allocation6], 4
      %s32 = int_to_ptr.vmem [resolvable:$true] %s31
      %37 = dma.hbm_to_vmem [thread:$0]  %s30, 13824, %s32, [#allocation7], 1152, 1152, 72
    $region9: #{tpu_custom_call.1} parent=1 // pred_fallthru
      _
    // Predicated region
    $region10: #{tpu_custom_call.1} parent=1 // pred_check
      _
    $region11: #{tpu_custom_call.1} parent=1 // pred_check_branch
      %39 = sbr.rel (0) target = $region13
    $region12: #{tpu_custom_call.1} parent=1 // pred_region
      _
    $region13: #{tpu_custom_call.1} parent=1 // pred_fallthru
      _
    // Predicated region
    $region14: #{tpu_custom_call.1} parent=1 // pred_check
      _
    $region15: #{tpu_custom_call.1} parent=1 // pred_check_branch
      %41 = sbr.rel (0) target = $region17
    $region16: #{tpu_custom_call.1} parent=1 // pred_region
      %43 = dma.done [#allocation4], 256
    $region17: #{tpu_custom_call.1} parent=1 // pred_fallthru
      _
    // Predicated region
    $region18: #{tpu_custom_call.1} parent=1 // pred_check
      _
    $region19: #{tpu_custom_call.1} parent=1 // pred_check_branch
      %45 = sbr.rel (0) target = $region21
    $region20: #{tpu_custom_call.1} parent=1 // pred_region
      %47 = dma.done [#allocation7], 13824
    $region21: #{tpu_custom_call.1} parent=1 // pred_fallthru
      _
    %v48 = vld [vmem:[#allocation3] sm:$0xff]
    %v49 = vld [vmem:[#allocation3 + $0x8] sm:$0x3]
    %v50 = vld [vmem:[#allocation6] sm:$0xff]
    %v51 = vld [vmem:[#allocation6 + $0x48] sm:$0xff]
    %v52 = vld [vmem:[#allocation6 + $0x90] sm:$0xff]
    %v53 = vld [vmem:[#allocation6 + $0xd8] sm:$0xff]
    %v54 = vld [vmem:[#allocation6 + $0x120] sm:$0xff]
    %v55 = vld [vmem:[#allocation6 + $0x168] sm:$0xff]
    %v56 = vld [vmem:[#allocation6 + $0x1b0] sm:$0xff]
    %v57 = vld [vmem:[#allocation6 + $0x1f8] sm:$0xff]
    %v58 = vld [vmem:[#allocation6 + $0x240] sm:$0xff]
    %v59 = vld [vmem:[#allocation6 + $0x288] sm:$0xff]
    %v60 = vld [vmem:[#allocation6 + $0x2d0] sm:$0xff]
    %v61 = vld [vmem:[#allocation6 + $0x318] sm:$0xff]
    %v62 = vld [vmem:[#allocation6 + $0x8] sm:$0xff]
    %v63 = vld [vmem:[#allocation6 + $0x50] sm:$0xff]
    %v64 = vld [vmem:[#allocation6 + $0x98] sm:$0xff]
    %v65 = vld [vmem:[#allocation6 + $0xe0] sm:$0xff]
    %v66 = vld [vmem:[#allocation6 + $0x128] sm:$0xff]
    %v67 = vld [vmem:[#allocation6 + $0x170] sm:$0xff]
    %v68 = vld [vmem:[#allocation6 + $0x1b8] sm:$0xff]
    %v69 = vld [vmem:[#allocation6 + $0x200] sm:$0xff]
    %v70 = vld [vmem:[#allocation6 + $0x248] sm:$0xff]
    %v71 = vld [vmem:[#allocation6 + $0x290] sm:$0xff]
    %v72 = vld [vmem:[#allocation6 + $0x2d8] sm:$0xff]
    %v73 = vld [vmem:[#allocation6 + $0x320] sm:$0xff]
    %v74 = vld [vmem:[#allocation6 + $0x10] sm:$0xff]
    %v75 = vld [vmem:[#allocation6 + $0x58] sm:$0xff]
    %v76 = vld [vmem:[#allocation6 + $0xa0] sm:$0xff]
    %v77 = vld [vmem:[#allocation6 + $0xe8] sm:$0xff]
    %v78 = vld [vmem:[#allocation6 + $0x18] sm:$0xff]
    %v79 = vld [vmem:[#allocation6 + $0x60] sm:$0xff]
    %v80 = vld [vmem:[#allocation6 + $0xa8] sm:$0xff]
    %v81 = vld [vmem:[#allocation6 + $0xf0] sm:$0xff]
    %v82 = vld [vmem:[#allocation6 + $0x20] sm:$0xff]
    %v83 = vld [vmem:[#allocation6 + $0x68] sm:$0xff]
    %v84 = vld [vmem:[#allocation6 + $0xb0] sm:$0xff]
    %v85 = vld [vmem:[#allocation6 + $0xf8] sm:$0xff]
    %v86 = vld [vmem:[#allocation6 + $0x140] sm:$0xff]
    %v87 = vld [vmem:[#allocation6 + $0x188] sm:$0xff]
    %v88 = vld [vmem:[#allocation6 + $0x1d0] sm:$0xff]
    %v89 = vld [vmem:[#allocation6 + $0x218] sm:$0xff]
    %v90 = vld [vmem:[#allocation6 + $0x28] sm:$0xff]
    %v91 = vld [vmem:[#allocation6 + $0x70] sm:$0xff]
    %v92 = vld [vmem:[#allocation6 + $0xb8] sm:$0xff]
    %v93 = vld [vmem:[#allocation6 + $0x100] sm:$0xff]
    %v94 = vld [vmem:[#allocation6 + $0x148] sm:$0xff]
    %v95 = vld [vmem:[#allocation6 + $0x190] sm:$0xff]
    %v96 = vld [vmem:[#allocation6 + $0x1d8] sm:$0xff]
    %v97 = vld [vmem:[#allocation6 + $0x220] sm:$0xff]
    %v98 = vld [vmem:[#allocation6 + $0x30] sm:$0xff]
    %v99 = vld [vmem:[#allocation6 + $0x78] sm:$0xff]
    %v100 = vld [vmem:[#allocation6 + $0xc0] sm:$0xff]
    %v101 = vld [vmem:[#allocation6 + $0x108] sm:$0xff]
    %v102 = vld [vmem:[#allocation6 + $0x150] sm:$0xff]
    %v103 = vld [vmem:[#allocation6 + $0x198] sm:$0xff]
    %v104 = vld [vmem:[#allocation6 + $0x1e0] sm:$0xff]
    %v105 = vld [vmem:[#allocation6 + $0x228] sm:$0xff]
    %v106 = vld [vmem:[#allocation6 + $0x38] sm:$0xff]
    %v107 = vld [vmem:[#allocation6 + $0x80] sm:$0xff]
    %v108 = vld [vmem:[#allocation6 + $0xc8] sm:$0xff]
    %v109 = vld [vmem:[#allocation6 + $0x110] sm:$0xff]
    %v110 = vld [vmem:[#allocation6 + $0x158] sm:$0xff]
    %v111 = vld [vmem:[#allocation6 + $0x1a0] sm:$0xff]
    %v112 = vld [vmem:[#allocation6 + $0x1e8] sm:$0xff]
    %v113 = vld [vmem:[#allocation6 + $0x230] sm:$0xff]
    %v114 = vld [vmem:[#allocation6 + $0x40] ss:$0 sm:$0xff]
    %s115 = sld [smem:[#allocation2]]
    %117 = vset.pattern.permute.xlu0 0
    %118 = vperm.xlu0 %117, %v62
    %v119 = vpop.permute.xlu0 %118
    %122 = vset.pattern.permute.xlu0 0
    %123 = vperm.xlu0 %122, %v63
    %v124 = vpop.permute.xlu0 %123
    %127 = vset.pattern.permute.xlu0 0
    %128 = vperm.xlu0 %127, %v64
    %v129 = vpop.permute.xlu0 %128
    %132 = vset.pattern.permute.xlu0 0
    %133 = vperm.xlu0 %132, %v65
    %v134 = vpop.permute.xlu0 %133
    %137 = vset.pattern.permute.xlu0 0
    %138 = vperm.xlu0 %137, %v66
    %v139 = vpop.permute.xlu0 %138
    %142 = vset.pattern.permute.xlu0 0
    %143 = vperm.xlu0 %142, %v67
    %v144 = vpop.permute.xlu0 %143
    %147 = vset.pattern.permute.xlu0 0
    %148 = vperm.xlu0 %147, %v68
    %v149 = vpop.permute.xlu0 %148
    %152 = vset.pattern.permute.xlu0 0
    %153 = vperm.xlu0 %152, %v69
    %v154 = vpop.permute.xlu0 %153
    %157 = vset.pattern.permute.xlu0 0
    %158 = vperm.xlu0 %157, %v70
    %v159 = vpop.permute.xlu0 %158
    %162 = vset.pattern.permute.xlu0 0
    %163 = vperm.xlu0 %162, %v71
    %v164 = vpop.permute.xlu0 %163
    %167 = vset.pattern.permute.xlu0 0
    %168 = vperm.xlu0 %167, %v72
    %v169 = vpop.permute.xlu0 %168
    %172 = vset.pattern.permute.xlu0 0
    %173 = vperm.xlu0 %172, %v73
    %v174 = vpop.permute.xlu0 %173
    %vm176 = vcmask 80896
    %v178 = vsel %vm176, %v50, 0
    %v181 = vsel %vm176, %v51, 0
    %v184 = vsel %vm176, %v52, 0
    %v187 = vsel %vm176, %v53, 0
    %v190 = vsel %vm176, %v54, 0
    %v193 = vsel %vm176, %v55, 0
    %v196 = vsel %vm176, %v56, 0
    %v199 = vsel %vm176, %v57, 0
    %v202 = vsel %vm176, %v58, 0
    %v205 = vsel %vm176, %v59, 0
    %v208 = vsel %vm176, %v60, 0
    %v211 = vsel %vm176, %v61, 0
    %vm213 = vcmask 1041408
    %v215 = vsel %vm213, %v49, 0
    %217 = vmatpush.msra.mxu0 0.0
    %218 = vmatpush.msra.mxu0 0.0
    %219 = vmatpush.msra.mxu0 0.0
    %220 = vmatpush.msra.mxu0 0.0
    %221 = vmatpush.msra.mxu0 0.0
    %222 = vmatpush.msra.mxu0 0.0
    %223 = vmatpush.msra.mxu0 0.0
    %224 = vmatpush.msra.mxu0 0.0
    %225 = vmatpush.msra.mxu0 0.0
    %226 = vmatpush.msra.mxu0 0.0
    %227 = vmatpush.msra.mxu0 0.0
    %228 = vmatpush.msra.mxu0 0.0
    %229 = vmatpush.msra.mxu0 0.0
    %230 = vmatpush.msra.mxu0 0.0
    %231 = vmatpush.msra.mxu0 %v215
    %232 = vmatpush.msra.mxu0 %v48
    %233 = vmatmul.f32.gmra.mxu0 %v178
    %v234 = vpop.f32.mrf.mxu0
    %v235 = vadd.f32 %v119, %v234
    %236 = vmatmul.f32.gmra.mxu0 %v181
    %v237 = vpop.f32.mrf.mxu0
    %v238 = vadd.f32 %v124, %v237
    %239 = vmatmul.f32.gmra.mxu0 %v184
    %v240 = vpop.f32.mrf.mxu0
    %v241 = vadd.f32 %v129, %v240
    %242 = vmatmul.f32.gmra.mxu0 %v187
    %v243 = vpop.f32.mrf.mxu0
    %v244 = vadd.f32 %v134, %v243
    %245 = vmatmul.f32.gmra.mxu0 %v190
    %v246 = vpop.f32.mrf.mxu0
    %v247 = vadd.f32 %v139, %v246
    %248 = vmatmul.f32.gmra.mxu0 %v193
    %v249 = vpop.f32.mrf.mxu0
    %v250 = vadd.f32 %v144, %v249
    %251 = vmatmul.f32.gmra.mxu0 %v196
    %v252 = vpop.f32.mrf.mxu0
    %v253 = vadd.f32 %v149, %v252
    %254 = vmatmul.f32.gmra.mxu0 %v199
    %v255 = vpop.f32.mrf.mxu0
    %v256 = vadd.f32 %v154, %v255
    %257 = vmatmul.f32.gmra.mxu0 %v202
    %v258 = vpop.f32.mrf.mxu0
    %v259 = vadd.f32 %v159, %v258
    %260 = vmatmul.f32.gmra.mxu0 %v205
    %v261 = vpop.f32.mrf.mxu0
    %v262 = vadd.f32 %v164, %v261
    %263 = vmatmul.f32.gmra.mxu0 %v208
    %v264 = vpop.f32.mrf.mxu0
    %v265 = vadd.f32 %v169, %v264
    %266 = vmatmul.f32.gmra.mxu0 %v211
    %v267 = vpop.f32.mrf.mxu0
    %v268 = vadd.f32 %v174, %v267
    %269 = vdwg.mxu0
    %v270 = vmul.f32 %v235, %v235
    %v271 = vmul.f32 %v238, %v238
    %v272 = vmul.f32 %v241, %v241
    %v273 = vmul.f32 %v244, %v244
    %v274 = vadd.f32 %v270, %v271
    %v275 = vadd.f32 %v274, %v272
    %v276 = vadd.f32 %v275, %v273
    %v277 = vrot.slane %v276, 4
    %v278 = vadd.f32 %v276, %v277
    %v279 = vrot.slane %v278, 2
    %v280 = vadd.f32 %v278, %v279
    %v281 = vrot.slane %v280, 1
    %v282 = vadd.f32 %v280, %v281
    %v283 = vrcp.pop 32.0
    %v284 = vmul.f32 32.0, %v283
    %v285 = vsub.f32 1.0, %v284
    %v286 = vmul.f32 %v283, %v285
    %v287 = vadd.f32 %v283, %v286
    %vm288 = vweird.f32 %v283
    %v289 = vsel %vm288, %v283, %v287
    %v290 = vmul.f32 %v282, %v289
    %v291 = vadd.f32 %v290, 1e-05
    %v292 = vrsqrt.pop %v291
    %v293 = vmul.f32 %v292, %v291
    %v294 = vmul.f32 %v293, %v292
    %v295 = vmul.f32 0.5, %v294
    %v296 = vsub.f32 1.5, %v295
    %v297 = vmul.f32 %v292, %v296
    %vm298 = vweird.f32 %v291
    %vm299 = vweird.f32 %v292
    %vm300 = vmor %vm298, %vm299
    %v301 = vsel %vm300, %v292, %v297
    %v302 = vmul.f32 %v235, %v301
    %v303 = vmul.f32 %v238, %v301
    %v304 = vmul.f32 %v241, %v301
    %v305 = vmul.f32 %v244, %v301
    %307 = vset.pattern.permute.xlu0 0
    %308 = vperm.xlu0 %307, %v74
    %v309 = vpop.permute.xlu0 %308
    %312 = vset.pattern.permute.xlu0 0
    %313 = vperm.xlu0 %312, %v75
    %v314 = vpop.permute.xlu0 %313
    %317 = vset.pattern.permute.xlu0 0
    %318 = vperm.xlu0 %317, %v76
    %v319 = vpop.permute.xlu0 %318
    %322 = vset.pattern.permute.xlu0 0
    %323 = vperm.xlu0 %322, %v77
    %v324 = vpop.permute.xlu0 %323
    %v326 = vmul.f32 %v302, %v309
    %v327 = vmul.f32 %v303, %v314
    %v328 = vmul.f32 %v304, %v319
    %v329 = vmul.f32 %v305, %v324
    %331 = vset.pattern.permute.xlu0 0
    %332 = vperm.xlu0 %331, %v78
    %v333 = vpop.permute.xlu0 %332
    %336 = vset.pattern.permute.xlu0 0
    %337 = vperm.xlu0 %336, %v79
    %v338 = vpop.permute.xlu0 %337
    %341 = vset.pattern.permute.xlu0 0
    %342 = vperm.xlu0 %341, %v80
    %v343 = vpop.permute.xlu0 %342
    %346 = vset.pattern.permute.xlu0 0
    %347 = vperm.xlu0 %346, %v81
    %v348 = vpop.permute.xlu0 %347
    %v350 = vadd.f32 %v326, %v333
    %v351 = vadd.f32 %v327, %v338
    %v352 = vadd.f32 %v328, %v343
    %v353 = vadd.f32 %v329, %v348
    %v354 = vmax.f32 %v350, 0.0
    %v355 = vmax.f32 %v351, 0.0
    %v356 = vmax.f32 %v352, 0.0
    %v357 = vmax.f32 %v353, 0.0
    %359 = vset.pattern.permute.xlu0 0
    %360 = vperm.xlu0 %359, %v90
    %v361 = vpop.permute.xlu0 %360
    %364 = vset.pattern.permute.xlu0 0
    %365 = vperm.xlu0 %364, %v91
    %v366 = vpop.permute.xlu0 %365
    %369 = vset.pattern.permute.xlu0 0
    %370 = vperm.xlu0 %369, %v92
    %v371 = vpop.permute.xlu0 %370
    %374 = vset.pattern.permute.xlu0 0
    %375 = vperm.xlu0 %374, %v93
    %v376 = vpop.permute.xlu0 %375
    %379 = vset.pattern.permute.xlu0 0
    %380 = vperm.xlu0 %379, %v94
    %v381 = vpop.permute.xlu0 %380
    %384 = vset.pattern.permute.xlu0 0
    %385 = vperm.xlu0 %384, %v95
    %v386 = vpop.permute.xlu0 %385
    %389 = vset.pattern.permute.xlu0 0
    %390 = vperm.xlu0 %389, %v96
    %v391 = vpop.permute.xlu0 %390
    %394 = vset.pattern.permute.xlu0 0
    %395 = vperm.xlu0 %394, %v97
    %v396 = vpop.permute.xlu0 %395
    %vm398 = vcmask 261120
    %v400 = vsel %vm398, %v82, 0
    %v403 = vsel %vm398, %v83, 0
    %v406 = vsel %vm398, %v84, 0
    %v409 = vsel %vm398, %v85, 0
    %v412 = vsel %vm398, %v86, 0
    %v415 = vsel %vm398, %v87, 0
    %v418 = vsel %vm398, %v88, 0
    %v421 = vsel %vm398, %v89, 0
    %423 = vmatpush.msra.mxu0 0.0
    %424 = vmatpush.msra.mxu0 0.0
    %425 = vmatpush.msra.mxu0 0.0
    %426 = vmatpush.msra.mxu0 0.0
    %427 = vmatpush.msra.mxu0 0.0
    %428 = vmatpush.msra.mxu0 0.0
    %429 = vmatpush.msra.mxu0 0.0
    %430 = vmatpush.msra.mxu0 0.0
    %431 = vmatpush.msra.mxu0 0.0
    %432 = vmatpush.msra.mxu0 0.0
    %433 = vmatpush.msra.mxu0 0.0
    %434 = vmatpush.msra.mxu0 0.0
    %435 = vmatpush.msra.mxu0 %v357
    %436 = vmatpush.msra.mxu0 %v356
    %437 = vmatpush.msra.mxu0 %v355
    %438 = vmatpush.msra.mxu0 %v354
    %439 = vmatmul.f32.gmra.mxu0 %v400
    %v440 = vpop.f32.mrf.mxu0
    %v441 = vadd.f32 %v361, %v440
    %442 = vmatmul.f32.gmra.mxu0 %v403
    %v443 = vpop.f32.mrf.mxu0
    %v444 = vadd.f32 %v366, %v443
    %445 = vmatmul.f32.gmra.mxu0 %v406
    %v446 = vpop.f32.mrf.mxu0
    %v447 = vadd.f32 %v371, %v446
    %448 = vmatmul.f32.gmra.mxu0 %v409
    %v449 = vpop.f32.mrf.mxu0
    %v450 = vadd.f32 %v376, %v449
    %451 = vmatmul.f32.gmra.mxu0 %v412
    %v452 = vpop.f32.mrf.mxu0
    %v453 = vadd.f32 %v381, %v452
    %454 = vmatmul.f32.gmra.mxu0 %v415
    %v455 = vpop.f32.mrf.mxu0
    %v456 = vadd.f32 %v386, %v455
    %457 = vmatmul.f32.gmra.mxu0 %v418
    %v458 = vpop.f32.mrf.mxu0
    %v459 = vadd.f32 %v391, %v458
    %460 = vmatmul.f32.gmra.mxu0 %v421
    %v461 = vpop.f32.mrf.mxu0
    %v462 = vadd.f32 %v396, %v461
    %463 = vdwg.mxu0
    %v464 = vmul.f32 %v441, %v441
    %v465 = vmul.f32 %v444, %v444
    %v466 = vmul.f32 %v447, %v447
    %v467 = vmul.f32 %v450, %v450
    %v468 = vmul.f32 %v453, %v453
    %v469 = vmul.f32 %v456, %v456
    %v470 = vmul.f32 %v459, %v459
    %v471 = vmul.f32 %v462, %v462
    %v472 = vadd.f32 %v464, %v465
    %v473 = vadd.f32 %v472, %v466
    %v474 = vadd.f32 %v473, %v467
    %v475 = vadd.f32 %v474, %v468
    %v476 = vadd.f32 %v475, %v469
    %v477 = vadd.f32 %v476, %v470
    %v478 = vadd.f32 %v477, %v471
    %v479 = vrot.slane %v478, 4
    %v480 = vadd.f32 %v478, %v479
    %v481 = vrot.slane %v480, 2
    %v482 = vadd.f32 %v480, %v481
    %v483 = vrot.slane %v482, 1
    %v484 = vadd.f32 %v482, %v483
    %v485 = vrcp.pop 64.0
    %v486 = vmul.f32 64.0, %v485
    %v487 = vsub.f32 1.0, %v486
    %v488 = vmul.f32 %v485, %v487
    %v489 = vadd.f32 %v485, %v488
    %vm490 = vweird.f32 %v485
    %v491 = vsel %vm490, %v485, %v489
    %v492 = vmul.f32 %v484, %v491
    %v493 = vadd.f32 %v492, 1e-05
    %v494 = vrsqrt.pop %v493
    %v495 = vmul.f32 %v494, %v493
    %v496 = vmul.f32 %v495, %v494
    %v497 = vmul.f32 0.5, %v496
    %v498 = vsub.f32 1.5, %v497
    %v499 = vmul.f32 %v494, %v498
    %vm500 = vweird.f32 %v493
    %vm501 = vweird.f32 %v494
    %vm502 = vmor %vm500, %vm501
    %v503 = vsel %vm502, %v494, %v499
    %v504 = vmul.f32 %v441, %v503
    %v505 = vmul.f32 %v444, %v503
    %v506 = vmul.f32 %v447, %v503
    %v507 = vmul.f32 %v450, %v503
    %v508 = vmul.f32 %v453, %v503
    %v509 = vmul.f32 %v456, %v503
    %v510 = vmul.f32 %v459, %v503
    %v511 = vmul.f32 %v462, %v503
    %513 = vset.pattern.permute.xlu0 0
    %514 = vperm.xlu0 %513, %v98
    %v515 = vpop.permute.xlu0 %514
    %518 = vset.pattern.permute.xlu0 0
    %519 = vperm.xlu0 %518, %v99
    %v520 = vpop.permute.xlu0 %519
    %523 = vset.pattern.permute.xlu0 0
    %524 = vperm.xlu0 %523, %v100
    %v525 = vpop.permute.xlu0 %524
    %528 = vset.pattern.permute.xlu0 0
    %529 = vperm.xlu0 %528, %v101
    %v530 = vpop.permute.xlu0 %529
    %533 = vset.pattern.permute.xlu0 0
    %534 = vperm.xlu0 %533, %v102
    %v535 = vpop.permute.xlu0 %534
    %538 = vset.pattern.permute.xlu0 0
    %539 = vperm.xlu0 %538, %v103
    %v540 = vpop.permute.xlu0 %539
    %543 = vset.pattern.permute.xlu0 0
    %544 = vperm.xlu0 %543, %v104
    %v545 = vpop.permute.xlu0 %544
    %548 = vset.pattern.permute.xlu0 0
    %549 = vperm.xlu0 %548, %v105
    %v550 = vpop.permute.xlu0 %549
    %v552 = vmul.f32 %v504, %v515
    %v553 = vmul.f32 %v505, %v520
    %v554 = vmul.f32 %v506, %v525
    %v555 = vmul.f32 %v507, %v530
    %v556 = vmul.f32 %v508, %v535
    %v557 = vmul.f32 %v509, %v540
    %v558 = vmul.f32 %v510, %v545
    %v559 = vmul.f32 %v511, %v550
    %561 = vset.pattern.permute.xlu0 0
    %562 = vperm.xlu0 %561, %v106
    %v563 = vpop.permute.xlu0 %562
    %566 = vset.pattern.permute.xlu0 0
    %567 = vperm.xlu0 %566, %v107
    %v568 = vpop.permute.xlu0 %567
    %571 = vset.pattern.permute.xlu0 0
    %572 = vperm.xlu0 %571, %v108
    %v573 = vpop.permute.xlu0 %572
    %576 = vset.pattern.permute.xlu0 0
    %577 = vperm.xlu0 %576, %v109
    %v578 = vpop.permute.xlu0 %577
    %581 = vset.pattern.permute.xlu0 0
    %582 = vperm.xlu0 %581, %v110
    %v583 = vpop.permute.xlu0 %582
    %586 = vset.pattern.permute.xlu0 0
    %587 = vperm.xlu0 %586, %v111
    %v588 = vpop.permute.xlu0 %587
    %591 = vset.pattern.permute.xlu0 0
    %592 = vperm.xlu0 %591, %v112
    %v593 = vpop.permute.xlu0 %592
    %596 = vset.pattern.permute.xlu0 0
    %597 = vperm.xlu0 %596, %v113
    %v598 = vpop.permute.xlu0 %597
    %v600 = vadd.f32 %v552, %v563
    %v601 = vadd.f32 %v553, %v568
    %v602 = vadd.f32 %v554, %v573
    %v603 = vadd.f32 %v555, %v578
    %v604 = vadd.f32 %v556, %v583
    %v605 = vadd.f32 %v557, %v588
    %v606 = vadd.f32 %v558, %v593
    %v607 = vadd.f32 %v559, %v598
    %v608 = vmax.f32 %v247, 0.0
    %v609 = vmax.f32 %v250, 0.0
    %v610 = vmax.f32 %v253, 0.0
    %v611 = vmax.f32 %v256, 0.0
    %v612 = vmax.f32 %v259, 0.0
    %v613 = vmax.f32 %v262, 0.0
    %v614 = vmax.f32 %v265, 0.0
    %v615 = vmax.f32 %v268, 0.0
    %v616 = vadd.f32 %v600, %v608
    %v617 = vadd.f32 %v601, %v609
    %v618 = vadd.f32 %v602, %v610
    %v619 = vadd.f32 %v603, %v611
    %v620 = vadd.f32 %v604, %v612
    %v621 = vadd.f32 %v605, %v613
    %v622 = vadd.f32 %v606, %v614
    %v623 = vadd.f32 %v607, %v615
    %v624 = vmax.f32 %v616, 0.0
    %v625 = vmax.f32 %v617, 0.0
    %v626 = vmax.f32 %v618, 0.0
    %v627 = vmax.f32 %v619, 0.0
    %v628 = vmax.f32 %v620, 0.0
    %v629 = vmax.f32 %v621, 0.0
    %v630 = vmax.f32 %v622, 0.0
    %v631 = vmax.f32 %v623, 0.0
    %v632 = vstv %s115
    %vm633 = vcmask 523264
    %v635 = vsel %vm633, %v114, 0
    %637 = vmatpush.msra.mxu0 0.0
    %638 = vmatpush.msra.mxu0 0.0
    %639 = vmatpush.msra.mxu0 0.0
    %640 = vmatpush.msra.mxu0 0.0
    %641 = vmatpush.msra.mxu0 0.0
    %642 = vmatpush.msra.mxu0 0.0
    %643 = vmatpush.msra.mxu0 0.0
    %644 = vmatpush.msra.mxu0 0.0
    %645 = vmatpush.msra.mxu0 %v631
    %646 = vmatpush.msra.mxu0 %v630
    %647 = vmatpush.msra.mxu0 %v629
    %648 = vmatpush.msra.mxu0 %v628
    %649 = vmatpush.msra.mxu0 %v627
    %650 = vmatpush.msra.mxu0 %v626
    %651 = vmatpush.msra.mxu0 %v625
    %652 = vmatpush.msra.mxu0 %v624
    %653 = vmatmul.f32.gmra.mxu0 %v635
    %v654 = vpop.f32.mrf.mxu0
    %v655 = vadd.f32 %v632, %v654
    %656 = vdwg.mxu0
    %657 = vst [vmem:[#allocation8] sm:$0x1] %v655
    // Predicated region
    $region22: #{tpu_custom_call.1} parent=1 // pred_check
      _
    $region23: #{tpu_custom_call.1} parent=1 // pred_check_branch
      %659 = sbr.rel (0) target = $region25
    $region24: #{tpu_custom_call.1} parent=1 // pred_region
      %661 = vsyncadd [#allocation5], 0
      %s663 = sshll.u32 [#allocation8], 4
      %s664 = int_to_ptr.vmem [resolvable:$true] %s663
      %s665 = sshll.u32 %s3, 4
      %s666 = int_to_ptr.hbm [resolvable:$true] %s665
      %668 = dma.vmem_to_hbm [thread:$0]  %s664, 16, %s666, [#allocation5]
    $region25: #{tpu_custom_call.1} parent=1 // pred_fallthru
      _
    // Predicated region
    $region26: #{tpu_custom_call.1} parent=1 // pred_check
      _
    $region27: #{tpu_custom_call.1} parent=1 // pred_check_branch
      %670 = sbr.rel (0) target = $region29
    $region28: #{tpu_custom_call.1} parent=1 // pred_region
      %672 = dma.done [#allocation5], 16
    $region29: #{tpu_custom_call.1} parent=1 // pred_fallthru
      _
    %673 = vsyncpa [#allocation4], 1
    %674 = vsyncpa [#allocation7], 1
    %675 = vsyncpa [#allocation5], 1

</llo_original>
